<compile_context>
chip_gen: v5e
topology: v5e:2x2
jax: 0.10.0
libtpu: 0.0.40
codegen_flags: <defaults>
</compile_context>

<pallas_src>
from functools import partial

import jax
import jax.numpy as jnp
from jax.experimental import pallas as pl
from jax.experimental.pallas import tpu as pltpu


def net_forward_kernel(x_ref, w_ref, b_ref, lab_ref, out_ref, *,
                       block_rows, n_valid, needs_mask):
    """One batch tile: logits = x@W + b ; partial sum of per-row cross-entropy."""
    i = pl.program_id(0)

    # --- embedding phase (MXU matmul, f32 accumulation) ---
    logits = jnp.dot(x_ref[...], w_ref[...], preferred_element_type=jnp.float32)
    logits = logits + b_ref[...].astype(jnp.float32)                     # [TM, C]

    # --- loss phase: CE without materializing log-softmax ---
    m = jnp.max(logits, axis=-1, keepdims=True)                          # [TM, 1]
    lse = jnp.log(jnp.sum(jnp.exp(logits - m), axis=-1, keepdims=True))  # [TM, 1]

    cls = jax.lax.broadcasted_iota(jnp.int32, logits.shape, 1)           # [TM, C]
    label_logit = jnp.sum(
        jnp.where(cls == lab_ref[...], logits, 0.0),                     # labels: [TM, 1]
        axis=-1, keepdims=True)                                          # [TM, 1]

    nll = (m + lse) - label_logit                                        # [TM, 1]

    if needs_mask:
        # Mask padded batch rows (global row id >= n_valid contributes 0).
        row = i * block_rows + jax.lax.broadcasted_iota(jnp.int32, nll.shape, 0)
        nll = jnp.where(row < n_valid, nll, 0.0)

    # Lane-dense, (8,128)-aligned partial-sum tile for this grid step.
    out_ref[...] = jnp.full(out_ref.shape, jnp.sum(nll), dtype=jnp.float32)


@partial(jax.jit, static_argnames=("block_rows", "mxu_dtype"))
def net_forward(x, w, b, labels, *, block_rows=128, mxu_dtype=jnp.bfloat16):
    """Wrapper: pad/tile the batch, launch the fused Pallas kernel, reduce partials."""
    B, D = x.shape
    Dw, C = w.shape
    assert Dw == D
    nblocks = pl.cdiv(B, block_rows)
    B_pad = nblocks * block_rows
    needs_mask = (B_pad != B)

    xk = x.astype(mxu_dtype)
    wk = w.astype(mxu_dtype)
    labels_i = labels.astype(jnp.int32)
    if needs_mask:
        xk = jnp.pad(xk, ((0, B_pad - B), (0, 0)))
        labels_i = jnp.pad(labels_i, (0, B_pad - B))
    lab2d = labels_i.reshape(B_pad, 1)
    b2d = b.reshape(1, C).astype(jnp.float32)

    kernel = partial(net_forward_kernel, block_rows=block_rows,
                     n_valid=B, needs_mask=needs_mask)

    itemsize = jnp.dtype(mxu_dtype).itemsize
    bytes_accessed = (B_pad * D * itemsize      # x tiles
                      + D * C * itemsize        # W (resident)
                      + C * 4                   # b
                      + B_pad * 4               # labels
                      + nblocks * 8 * 128 * 4)  # partial-sum tiles

    partial_tiles = pl.pallas_call(
        kernel,
        out_shape=jax.ShapeDtypeStruct((nblocks * 8, 128), jnp.float32),
        grid_spec=pltpu.PrefetchScalarGridSpec(
            num_scalar_prefetch=0,
            grid=(nblocks,),
            in_specs=[
                pl.BlockSpec((block_rows, D), lambda i: (i, 0)),  # x tile (pipelined)
                pl.BlockSpec((D, C), lambda i: (0, 0)),           # W resident
                pl.BlockSpec((1, C), lambda i: (0, 0)),           # b resident
                pl.BlockSpec((block_rows, 1), lambda i: (i, 0)),  # int labels tile
            ],
            out_specs=pl.BlockSpec((8, 128), lambda i: (i, 0)),   # per-block partial sum
        ),
        compiler_params=pltpu.CompilerParams(
            dimension_semantics=("parallel",),     # batch blocks are independent
            vmem_limit_bytes=32 * 1024 * 1024,     # safe on v5e/v6e/v7x
        ),
        cost_estimate=pl.CostEstimate(
            flops=2 * B_pad * D * C,
            transcendentals=B_pad * C,
            bytes_accessed=bytes_accessed,
        ),
    )(xk, wk, b2d, lab2d)

    # One partial sum per block (tile holds the same value everywhere); global mean.
    partials = partial_tiles.reshape(nblocks, 8, 128)[:, 0, 0]
    return jnp.sum(partials) / jnp.float32(B)


def reference_forward(x, w, b, labels, *, mxu_dtype=jnp.bfloat16):
    """Pure-JAX reference with the same MXU input precision as the kernel."""
    xf = x.astype(mxu_dtype).astype(jnp.float32)
    wf = w.astype(mxu_dtype).astype(jnp.float32)
    logits = xf @ wf + b.astype(jnp.float32)
    logp = jax.nn.log_softmax(logits, axis=-1)
    nll = -jnp.take_along_axis(logp, labels[:, None].astype(jnp.int32), axis=-1)[:, 0]
    return jnp.mean(nll)


if __name__ == "__main__":
    # Small, tiling-friendly shapes; B not a multiple of the 128-row tile so the
    # padded-row masking path is exercised (2 grid blocks).
    B, D, C = 200, 128, 128

    key = jax.random.PRNGKey(0)
    kx, kw, kb, ky = jax.random.split(key, 4)

    x = jax.random.normal(kx, (B, D), dtype=jnp.float32)
    # Deterministic synthetic parameters (no checkpoint load).
    w = jax.random.normal(kw, (D, C), dtype=jnp.float32) * (1.0 / jnp.sqrt(D))
    b = jax.random.normal(kb, (C,), dtype=jnp.float32) * 0.01
    labels = jax.random.randint(ky, (B,), 0, C, dtype=jnp.int32)

    loss = jax.block_until_ready(net_forward(x, w, b, labels))
    ref = jax.block_until_ready(reference_forward(x, w, b, labels))

    assert jnp.allclose(loss, ref, rtol=5e-3, atol=5e-3), (loss, ref)
    print("KERNEL_OK")
</pallas_src>

<mosaic_0001>
module attributes {stable_mosaic.version = 11 : i64} {
  func.func @net_forward_kernel(%arg0: i32, %arg1: memref<128x128xbf16, #tpu.memory_space<vmem>>, %arg2: memref<128x128xbf16, #tpu.memory_space<vmem>>, %arg3: memref<1x128xf32, #tpu.memory_space<vmem>>, %arg4: memref<128x1xi32, #tpu.memory_space<vmem>>, %arg5: memref<8x128xf32, #tpu.memory_space<vmem>>) attributes {dimension_semantics = [#tpu.dimension_semantics<parallel>], iteration_bounds = array<i64: 2>, scalar_prefetch = 0 : i64, scratch_operands = 0 : i64, tpu.core_type = #tpu.core_type<tc>, window_params = [{transform_indices = @transform_0, window_bounds = array<i64: 128, 128>}, {pipeline_mode = #tpu.pipeline_mode<synchronous>, transform_indices = @transform_1, window_bounds = array<i64: 128, 128>}, {pipeline_mode = #tpu.pipeline_mode<synchronous>, transform_indices = @transform_2, window_bounds = array<i64: 1, 128>}, {transform_indices = @transform_3, window_bounds = array<i64: 128, 1>}, {transform_indices = @transform_4, window_bounds = array<i64: 8, 128>}]} {
    %c0 = arith.constant 0 : index
    %c0_0 = arith.constant 0 : index
    %0 = vector.load %arg1[%c0, %c0_0] : memref<128x128xbf16, #tpu.memory_space<vmem>>, vector<128x128xbf16>
    %c0_1 = arith.constant 0 : index
    %c0_2 = arith.constant 0 : index
    %1 = vector.load %arg2[%c0_1, %c0_2] : memref<128x128xbf16, #tpu.memory_space<vmem>>, vector<128x128xbf16>
    %cst = arith.constant dense<0.000000e+00> : vector<128x128xf32>
    %2 = tpu.matmul %0, %1, %cst {dimension_numbers = #tpu.dot_dimension_numbers<[1], [0], [0], [1], [0, 0, 1, 1], [], []>} : vector<128x128xbf16>, vector<128x128xbf16>, vector<128x128xf32> -> vector<128x128xf32>
    %c0_3 = arith.constant 0 : index
    %c0_4 = arith.constant 0 : index
    %3 = vector.load %arg3[%c0_3, %c0_4] : memref<1x128xf32, #tpu.memory_space<vmem>>, vector<1x128xf32>
    %4 = vector.broadcast %3 : vector<1x128xf32> to vector<128x128xf32>
    %5 = arith.addf %2, %4 : vector<128x128xf32>
    %cst_5 = arith.constant dense<0xFF800000> : vector<128xf32>
    %6 = vector.multi_reduction <maximumf>, %5, %cst_5 [1] : vector<128x128xf32> to vector<128xf32>
    %7 = vector.shape_cast %6 : vector<128xf32> to vector<128x1xf32>
    %8 = vector.broadcast %7 : vector<128x1xf32> to vector<128x128xf32>
    %9 = arith.subf %5, %8 : vector<128x128xf32>
    %10 = math.exp %9 : vector<128x128xf32>
    %cst_6 = arith.constant dense<0.000000e+00> : vector<128xf32>
    %11 = vector.multi_reduction <add>, %10, %cst_6 [1] : vector<128x128xf32> to vector<128xf32>
    %12 = vector.shape_cast %11 : vector<128xf32> to vector<128x1xf32>
    %13 = math.log %12 : vector<128x1xf32>
    %14 = tpu.iota {dimensions = array<i32: 1>} : vector<128x128xi32>
    %c0_7 = arith.constant 0 : index
    %c0_8 = arith.constant 0 : index
    %15 = vector.load %arg4[%c0_7, %c0_8] : memref<128x1xi32, #tpu.memory_space<vmem>>, vector<128x1xi32>
    %16 = vector.broadcast %15 : vector<128x1xi32> to vector<128x128xi32>
    %17 = arith.cmpi eq, %14, %16 : vector<128x128xi32>
    %cst_9 = arith.constant 0.000000e+00 : f32
    %18 = vector.broadcast %cst_9 : f32 to vector<128x128xf32>
    %19 = arith.select %17, %5, %18 : vector<128x128xi1>, vector<128x128xf32>
    %cst_10 = arith.constant dense<0.000000e+00> : vector<128xf32>
    %20 = vector.multi_reduction <add>, %19, %cst_10 [1] : vector<128x128xf32> to vector<128xf32>
    %21 = vector.shape_cast %20 : vector<128xf32> to vector<128x1xf32>
    %22 = arith.addf %7, %13 : vector<128x1xf32>
    %23 = arith.subf %22, %21 : vector<128x1xf32>
    %c128_i32 = arith.constant 128 : i32
    %24 = arith.muli %arg0, %c128_i32 : i32
    %25 = tpu.iota {dimensions = array<i32: 0>} : vector<128x1xi32>
    %26 = vector.broadcast %24 : i32 to vector<128x1xi32>
    %27 = arith.addi %26, %25 : vector<128x1xi32>
    %c200_i32 = arith.constant 200 : i32
    %28 = vector.broadcast %c200_i32 : i32 to vector<128x1xi32>
    %29 = arith.cmpi slt, %27, %28 : vector<128x1xi32>
    %cst_11 = arith.constant 0.000000e+00 : f32
    %30 = vector.broadcast %cst_11 : f32 to vector<128x1xf32>
    %31 = arith.select %29, %23, %30 : vector<128x1xi1>, vector<128x1xf32>
    %32 = vector.shape_cast %31 : vector<128x1xf32> to vector<1x128x1xf32>
    %cst_12 = arith.constant dense<0.000000e+00> : vector<1xf32>
    %33 = vector.multi_reduction <add>, %32, %cst_12 [1, 2] : vector<1x128x1xf32> to vector<1xf32>
    %34 = vector.shape_cast %33 : vector<1xf32> to vector<1x1x1xf32>
    %35 = vector.extract %34[0, 0, 0] : f32 from vector<1x1x1xf32>
    %36 = vector.broadcast %35 : f32 to vector<8x128xf32>
    %c0_13 = arith.constant 0 : index
    %c0_14 = arith.constant 0 : index
    %37 = vector.load %arg5[%c0_13, %c0_14] : memref<8x128xf32, #tpu.memory_space<vmem>>, vector<8x128xf32>
    tpu.vector_store %arg5[%c0_13, %c0_14], %36 {strides = array<i32>} : memref<8x128xf32, #tpu.memory_space<vmem>>, vector<8x128xf32>,
    return
  }
  func.func @transform_0(%arg0: i32) -> (i32, i32) {
    %c0_i32 = arith.constant 0 : i32
    %c0_i32_0 = arith.constant 0 : i32
    return %arg0, %c0_i32 : i32, i32
  }
  func.func @transform_1(%arg0: i32) -> (i32, i32) {
    %c0_i32 = arith.constant 0 : i32
    %c0_i32_0 = arith.constant 0 : i32
    %c0_i32_1 = arith.constant 0 : i32
    return %c0_i32, %c0_i32_0 : i32, i32
  }
  func.func @transform_2(%arg0: i32) -> (i32, i32) {
    %c0_i32 = arith.constant 0 : i32
    %c0_i32_0 = arith.constant 0 : i32
    %c0_i32_1 = arith.constant 0 : i32
    return %c0_i32, %c0_i32_0 : i32, i32
  }
  func.func @transform_3(%arg0: i32) -> (i32, i32) {
    %c0_i32 = arith.constant 0 : i32
    %c0_i32_0 = arith.constant 0 : i32
    return %arg0, %c0_i32 : i32, i32
  }
  func.func @transform_4(%arg0: i32) -> (i32, i32) {
    %c0_i32 = arith.constant 0 : i32
    %c0_i32_0 = arith.constant 0 : i32
    return %arg0, %c0_i32 : i32, i32
  }
}

</mosaic_0001>

<llo_original>
// kernel: net_forward.1
$region0: #{net_forward.1}
  #allocation0 [shape = 'u32[]', space=smem, size = 0x4, offset = 0x4, fixed_abs, tag = 'smem constant byte address 0x4 - core index']
  #allocation1 [shape = 'u32[72,128]{1,0:T(1,128)}', space=vmem, size = 0x9000, scoped, tag = 'internal scratch']
  %s0 = inlined_call_operand.vmem [shape: bf16[256,128], index: 0, kind: input, shape index: {}]
  %s1 = inlined_call_operand.vmem [shape: bf16[128,128], index: 1, kind: input, shape index: {}]
  %s2 = inlined_call_operand.vmem [shape: f32[1,128], index: 2, kind: input, shape index: {}]
  %s3 = inlined_call_operand.vmem [shape: s32[256,1], index: 3, kind: input, shape index: {}]
  %s4 = inlined_call_operand.vmem [shape: f32[16,128], index: 4, kind: output, shape index: {}]
  %s5 = sld [smem:[#allocation0]]
  $region49: #{net_forward.1} parent=0
    _
  %s7 = ssub.s32 1, %s5
  %s8 = scalar_select 0, %s7, %s5
  loop: start=0, step=1, limit=4
  $region2: #{net_forward.1} parent=0 // loop_pre_header
    _
  $region3: #{net_forward.1} parent=0 // loop_header
    %s10 = sphi 0, %s14
    %p11 = scmp.ge.s32.totalorder %s10, 4
    %s20 = sphi 0, %s22
    %s23 = sphi 0, %s20
    %s24 = sphi 0, %s23
    %s40 = sphi 0, %s24
    %s44 = sphi 0, %s44
    %s46 = sphi 0, %s44
    %s47 = sphi 0, %s46
    %s61 = sphi 0, %s47
    %s65 = sphi 0, %s65
    %s67 = sphi 0, %s65
    %s68 = sphi 0, %s67
    %s82 = sphi 0, %s68
    %s88 = sphi 0, %s90
    %s91 = sphi 0, %s88
    %s92 = sphi 0, %s91
    %s108 = sphi 0, %s92
    %s114 = sphi 0, %s116
    %s117 = sphi 0, %s114
    %s118 = sphi 0, %s117
    %s134 = sphi 0, %s118
  $region4: #{net_forward.1} parent=0 // loop_header_branch
    %13 = sbr.rel (%p11) target = $region8
  $region5: #{net_forward.1} parent=0 // loop_body
    %s15 = ssub.s32 %s10, 1
    %s16 = ssub.s32 %s10, 2
    %s17 = sadd.s32 %s10, 1
    %s18 = ssub.s32 %s10, %s17
    %p19 = scmp.eq.s32.totalorder %s18, 0
    %s21 = sadd.s32 %s20, 1
    %s22 = scalar_select %p19, %s20, %s21
    %p25 = pneg %p19
    %p26 = scmp.eq.s32.totalorder %s10, 1
    %p27 = por %p25, %p26
    %p28 = scmp.ne.s32.totalorder %s20, %s23
    %p29 = scmp.eq.s32.totalorder %s10, 0
    %p30 = por %p28, %p29
    %p31 = scmp.ne.s32.totalorder %s20, %s23
    %p32 = scmp.eq.s32.totalorder %s15, 1
    %p33 = por %p31, %p32
    %p34 = scmp.ne.s32.totalorder %s23, %s24
    %p35 = scmp.eq.s32.totalorder %s15, 0
    %p36 = por %p34, %p35
    %p37 = scmp.ne.s32.totalorder %s23, %s24
    %p38 = scmp.eq.s32.totalorder %s16, 1
    %p39 = por %p37, %p38
    %p41 = scmp.ne.s32.totalorder %s24, %s40
    %p42 = scmp.eq.s32.totalorder %s16, 0
    %p43 = por %p41, %p42
    %s45 = sadd.s32 %s44, 1
    %p48 = scmp.eq.s32.totalorder %s10, 1
    %p49 = scmp.ne.s32.totalorder %s44, %s46
    %p50 = scmp.eq.s32.totalorder %s10, 0
    %p51 = por %p49, %p50
    %p52 = scmp.ne.s32.totalorder %s44, %s46
    %p53 = scmp.eq.s32.totalorder %s15, 1
    %p54 = por %p52, %p53
    %p55 = scmp.ne.s32.totalorder %s46, %s47
    %p56 = scmp.eq.s32.totalorder %s15, 0
    %p57 = por %p55, %p56
    %p58 = scmp.ne.s32.totalorder %s46, %s47
    %p59 = scmp.eq.s32.totalorder %s16, 1
    %p60 = por %p58, %p59
    %p62 = scmp.ne.s32.totalorder %s47, %s61
    %p63 = scmp.eq.s32.totalorder %s16, 0
    %p64 = por %p62, %p63
    %s66 = sadd.s32 %s65, 1
    %p69 = scmp.eq.s32.totalorder %s10, 1
    %p70 = scmp.ne.s32.totalorder %s65, %s67
    %p71 = scmp.eq.s32.totalorder %s10, 0
    %p72 = por %p70, %p71
    %p73 = scmp.ne.s32.totalorder %s65, %s67
    %p74 = scmp.eq.s32.totalorder %s15, 1
    %p75 = por %p73, %p74
    %p76 = scmp.ne.s32.totalorder %s67, %s68
    %p77 = scmp.eq.s32.totalorder %s15, 0
    %p78 = por %p76, %p77
    %p79 = scmp.ne.s32.totalorder %s67, %s68
    %p80 = scmp.eq.s32.totalorder %s16, 1
    %p81 = por %p79, %p80
    %p83 = scmp.ne.s32.totalorder %s68, %s82
    %p84 = scmp.eq.s32.totalorder %s16, 0
    %p85 = por %p83, %p84
    %s86 = ssub.s32 %s10, %s17
    %p87 = scmp.eq.s32.totalorder %s86, 0
    %s89 = sadd.s32 %s88, 1
    %s90 = scalar_select %p87, %s88, %s89
    %p93 = pneg %p87
    %p94 = scmp.eq.s32.totalorder %s10, 1
    %p95 = por %p93, %p94
    %p96 = scmp.ne.s32.totalorder %s88, %s91
    %p97 = scmp.eq.s32.totalorder %s10, 0
    %p98 = por %p96, %p97
    %p99 = scmp.ne.s32.totalorder %s88, %s91
    %p100 = scmp.eq.s32.totalorder %s15, 1
    %p101 = por %p99, %p100
    %p102 = scmp.ne.s32.totalorder %s91, %s92
    %p103 = scmp.eq.s32.totalorder %s15, 0
    %p104 = por %p102, %p103
    %p105 = scmp.ne.s32.totalorder %s91, %s92
    %p106 = scmp.eq.s32.totalorder %s16, 1
    %p107 = por %p105, %p106
    %p109 = scmp.ne.s32.totalorder %s92, %s108
    %p110 = scmp.eq.s32.totalorder %s16, 0
    %p111 = por %p109, %p110
    %s112 = ssub.s32 %s10, %s17
    %p113 = scmp.eq.s32.totalorder %s112, 0
    %s115 = sadd.s32 %s114, 1
    %s116 = scalar_select %p113, %s114, %s115
    %p119 = pneg %p113
    %p120 = scmp.eq.s32.totalorder %s10, 1
    %p121 = por %p119, %p120
    %p122 = scmp.ne.s32.totalorder %s114, %s117
    %p123 = scmp.eq.s32.totalorder %s10, 0
    %p124 = por %p122, %p123
    %p125 = scmp.ne.s32.totalorder %s114, %s117
    %p126 = scmp.eq.s32.totalorder %s15, 1
    %p127 = por %p125, %p126
    %p128 = scmp.ne.s32.totalorder %s117, %s118
    %p129 = scmp.eq.s32.totalorder %s15, 0
    %p130 = por %p128, %p129
    %p131 = scmp.ne.s32.totalorder %s117, %s118
    %p132 = scmp.eq.s32.totalorder %s16, 1
    %p133 = por %p131, %p132
    %p135 = scmp.ne.s32.totalorder %s118, %s134
    %p136 = scmp.eq.s32.totalorder %s16, 0
    %p137 = por %p135, %p136
    %p138 = scmp.le.s32.totalorder 1, %s10
    %p139 = scmp.lt.s32.totalorder %s10, 3
    %p140 = pnand %p138, %p139
    %p141 = pneg %p140
    // Predicated region
    $region9: #{net_forward.1} parent=5 // pred_check
      _
    $region10: #{net_forward.1} parent=5 // pred_check_branch
      %143 = sbr.rel (%p140) target = $region12
    $region11: #{net_forward.1} parent=5 // pred_region
      %s144 = ssub.s32 %s10, 1
      // Predicated region
      $region13: #{net_forward.1} parent=11 // pred_check
        %p145 = pneg %p57
      $region14: #{net_forward.1} parent=11 // pred_check_branch
        %147 = sbr.rel (%p145) target = $region16
      $region15: #{net_forward.1} parent=11 // pred_region
        _
      $region16: #{net_forward.1} parent=11 // pred_fallthru
        _
      // Predicated region
      $region17: #{net_forward.1} parent=11 // pred_check
        %p148 = pneg %p78
      $region18: #{net_forward.1} parent=11 // pred_check_branch
        %150 = sbr.rel (%p148) target = $region20
      $region19: #{net_forward.1} parent=11 // pred_region
        _
      $region20: #{net_forward.1} parent=11 // pred_fallthru
        _
    $region12: #{net_forward.1} parent=5 // pred_fallthru
      _
    %p151 = scmp.lt.s32.totalorder %s10, 2
    // Predicated region
    $region21: #{net_forward.1} parent=5 // pred_check
      %p152 = pneg %p151
    $region22: #{net_forward.1} parent=5 // pred_check_branch
      %154 = sbr.rel (%p152) target = $region24
    $region23: #{net_forward.1} parent=5 // pred_region
      // Predicated region
      $region25: #{net_forward.1} parent=23 // pred_check
        %p155 = pneg %p30
      $region26: #{net_forward.1} parent=23 // pred_check_branch
        %157 = sbr.rel (%p155) target = $region28
      $region27: #{net_forward.1} parent=23 // pred_region
        %s158 = smul.u32 16, %s10
        %p159 = scmp.lt.s32.totalorder %s158, 31
        %s160 = scalar_select %p159, %s158, 31
        %s161 = smul.addr %s160, 4
        %s162 = scalar_lea.vmem %s0, %s161
        %s163 = smul.u32 16, %s10
      $region28: #{net_forward.1} parent=23 // pred_fallthru
        _
      // Predicated region
      $region29: #{net_forward.1} parent=23 // pred_check
        %p164 = pneg %p98
      $region30: #{net_forward.1} parent=23 // pred_check_branch
        %166 = sbr.rel (%p164) target = $region32
      $region31: #{net_forward.1} parent=23 // pred_region
        %s167 = smul.u32 16, %s10
        %p168 = scmp.lt.s32.totalorder %s167, 31
        %s169 = scalar_select %p168, %s167, 31
        %s170 = smul.addr %s169, 8
        %s171 = scalar_lea.vmem %s3, %s170
        %s172 = smul.u32 16, %s10
      $region32: #{net_forward.1} parent=23 // pred_fallthru
        _
    $region24: #{net_forward.1} parent=5 // pred_fallthru
      _
    %p173 = scmp.le.s32.totalorder 1, %s10
    %p174 = scmp.lt.s32.totalorder %s10, 3
    %p175 = pnand %p173, %p174
    %p176 = pneg %p175
    // Predicated region
    $region33: #{net_forward.1} parent=5 // pred_check
      _
    $region34: #{net_forward.1} parent=5 // pred_check_branch
      %178 = sbr.rel (%p175) target = $region36
    $region35: #{net_forward.1} parent=5 // pred_region
      %s179 = ssub.s32 %s10, 1
      %s180 = smul.u32 16, %s15
      %p181 = scmp.lt.s32.totalorder %s180, 31
      %s182 = scalar_select %p181, %s180, 31
      %s183 = smul.addr %s182, 4
      %s184 = scalar_lea.vmem %s0, %s183
      %p185 = pneg %p36
      %p186 = pneg %p33
      %p187 = pneg %p57
      %p188 = pneg %p54
      %p189 = pneg %p78
      %p190 = pneg %p75
      %s191 = smul.u32 16, %s15
      %p192 = scmp.lt.s32.totalorder %s191, 31
      %s193 = scalar_select %p192, %s191, 31
      %s194 = smul.addr %s193, 8
      %s195 = scalar_lea.vmem %s3, %s194
      %p196 = pneg %p104
      %p197 = pneg %p101
      %p198 = pneg %p130
      %p199 = pneg %p127
      %p200 = scmp.lt.s32.totalorder %s15, 1
      %s201 = scalar_select %p200, %s15, 1
      %s202 = smul.addr %s201, 8
      %s203 = scalar_lea.vmem %s4, %s202
      %s204 = smul.u32 16, %s15
      %p205 = scmp.lt.s32.totalorder %s204, 31
      %s206 = scalar_select %p205, %s204, 31
      %s207 = smul.addr %s206, 4
      %s208 = scalar_lea.vmem %s0, %s207
      %s209 = smul.u32 16, %s15
      %s210 = smul.u32 16, %s15
      %p211 = scmp.lt.s32.totalorder %s210, 31
      %s212 = scalar_select %p211, %s210, 31
      %s213 = smul.addr %s212, 8
      %s214 = scalar_lea.vmem %s3, %s213
      %s215 = smul.u32 16, %s15
      %p216 = scmp.lt.s32.totalorder %s15, 1
      %s217 = scalar_select %p216, %s15, 1
      %s218 = smul.addr %s217, 8
      %s219 = scalar_lea.vmem %s4, %s218
      %v220 = vld [vmem:[%s208] sm:$0xf]
      %v221 = vld [vmem:[%s208 + $0x4] sm:$0xf]
      %v222 = vld [vmem:[%s208 + $0x8] sm:$0xf]
      %v223 = vld [vmem:[%s208 + $0xc] sm:$0xf]
      %v224 = vld [vmem:[%s208 + $0x10] sm:$0xf]
      %v225 = vld [vmem:[%s208 + $0x14] sm:$0xf]
      %v226 = vld [vmem:[%s208 + $0x18] sm:$0xf]
      %v227 = vld [vmem:[%s208 + $0x1c] sm:$0xf]
      %v228 = vld [vmem:[%s208 + $0x20] sm:$0xf]
      %v229 = vld [vmem:[%s208 + $0x24] sm:$0xf]
      %v230 = vld [vmem:[%s208 + $0x28] sm:$0xf]
      %v231 = vld [vmem:[%s208 + $0x2c] sm:$0xf]
      %v232 = vld [vmem:[%s208 + $0x30] sm:$0xf]
      %v233 = vld [vmem:[%s208 + $0x34] sm:$0xf]
      %v234 = vld [vmem:[%s208 + $0x38] sm:$0xf]
      %v235 = vld [vmem:[%s208 + $0x3c] sm:$0xf]
      %v236 = vld [vmem:[%s1] sm:$0xf]
      %v237 = vld [vmem:[%s1 + $0x4] sm:$0xf]
      %v238 = vld [vmem:[%s1 + $0x8] sm:$0xf]
      %v239 = vld [vmem:[%s1 + $0xc] sm:$0xf]
      %v240 = vld [vmem:[%s1 + $0x10] sm:$0xf]
      %v241 = vld [vmem:[%s1 + $0x14] sm:$0xf]
      %v242 = vld [vmem:[%s1 + $0x18] sm:$0xf]
      %v243 = vld [vmem:[%s1 + $0x1c] sm:$0xf]
      %v244 = vld [vmem:[%s1 + $0x20] sm:$0xf]
      %v245 = vld [vmem:[%s1 + $0x24] sm:$0xf]
      %v246 = vld [vmem:[%s1 + $0x28] sm:$0xf]
      %v247 = vld [vmem:[%s1 + $0x2c] sm:$0xf]
      %v248 = vld [vmem:[%s1 + $0x30] sm:$0xf]
      %v249 = vld [vmem:[%s1 + $0x34] sm:$0xf]
      %v250 = vld [vmem:[%s1 + $0x38] sm:$0xf]
      %v251 = vld [vmem:[%s1 + $0x3c] sm:$0xf]
      %v252 = vld [vmem:[%s2] sm:$0x1]
      %v254 = vperm.slane %v252, 0
      %v272 = vunpack.c.l.b16 %v220
      %v273 = vunpack.c.l.b16 %v221
      %v274 = vunpack.c.l.b16 %v222
      %v275 = vunpack.c.l.b16 %v223
      %v276 = vunpack.c.l.b16 %v224
      %v277 = vunpack.c.l.b16 %v225
      %v278 = vunpack.c.l.b16 %v226
      %v279 = vunpack.c.l.b16 %v227
      %v280 = vunpack.c.l.b16 %v228
      %v281 = vunpack.c.l.b16 %v229
      %v282 = vunpack.c.l.b16 %v230
      %v283 = vunpack.c.l.b16 %v231
      %v284 = vunpack.c.l.b16 %v232
      %v285 = vunpack.c.l.b16 %v233
      %v286 = vunpack.c.l.b16 %v234
      %v287 = vunpack.c.l.b16 %v235
      %v288 = vpack.c.b16 %v273, %v272
      %v289 = vpack.c.b16 %v275, %v274
      %v290 = vpack.c.b16 %v277, %v276
      %v291 = vpack.c.b16 %v279, %v278
      %v292 = vpack.c.b16 %v281, %v280
      %v293 = vpack.c.b16 %v283, %v282
      %v294 = vpack.c.b16 %v285, %v284
      %v295 = vpack.c.b16 %v287, %v286
      %v320 = vunpack.c.l.b16 %v236
      %v321 = vunpack.c.l.b16 %v237
      %v322 = vunpack.c.l.b16 %v238
      %v323 = vunpack.c.l.b16 %v239
      %v324 = vunpack.c.l.b16 %v240
      %v325 = vunpack.c.l.b16 %v241
      %v326 = vunpack.c.l.b16 %v242
      %v327 = vunpack.c.l.b16 %v243
      %v328 = vunpack.c.l.b16 %v244
      %v329 = vunpack.c.l.b16 %v245
      %v330 = vunpack.c.l.b16 %v246
      %v331 = vunpack.c.l.b16 %v247
      %v332 = vunpack.c.l.b16 %v248
      %v333 = vunpack.c.l.b16 %v249
      %v334 = vunpack.c.l.b16 %v250
      %v335 = vunpack.c.l.b16 %v251
      %v336 = vpack.c.b16 %v321, %v320
      %v337 = vpack.c.b16 %v323, %v322
      %v338 = vpack.c.b16 %v325, %v324
      %v339 = vpack.c.b16 %v327, %v326
      %v340 = vpack.c.b16 %v329, %v328
      %v341 = vpack.c.b16 %v331, %v330
      %v342 = vpack.c.b16 %v333, %v332
      %v343 = vpack.c.b16 %v335, %v334
      %352 = vmatpush.bf16.msra.mxu0 %v343
      %353 = vmatpush.bf16.msra.mxu0 %v342
      %354 = vmatpush.bf16.msra.mxu0 %v341
      %355 = vmatpush.bf16.msra.mxu0 %v340
      %356 = vmatpush.bf16.msra.mxu0 %v339
      %357 = vmatpush.bf16.msra.mxu0 %v338
      %358 = vmatpush.bf16.msra.mxu0 %v337
      %359 = vmatpush.bf16.msra.mxu0 %v336
      %360 = vmatmul.bf16.gmra.mxu0 %v288
      %v361 = vpop.f32.mrf.mxu0
      %v362 = vadd.f32 %v254, %v361
      %v363 = vpop.f32.mrf.mxu0
      %v364 = vadd.f32 %v254, %v363
      %365 = vmatmul.bf16.gmra.mxu0 %v289
      %v366 = vpop.f32.mrf.mxu0
      %v367 = vadd.f32 %v254, %v366
      %v368 = vpop.f32.mrf.mxu0
      %v369 = vadd.f32 %v254, %v368
      %370 = vmatmul.bf16.gmra.mxu0 %v290
      %v371 = vpop.f32.mrf.mxu0
      %v372 = vadd.f32 %v254, %v371
      %v373 = vpop.f32.mrf.mxu0
      %v374 = vadd.f32 %v254, %v373
      %375 = vmatmul.bf16.gmra.mxu0 %v291
      %v376 = vpop.f32.mrf.mxu0
      %v377 = vadd.f32 %v254, %v376
      %v378 = vpop.f32.mrf.mxu0
      %v379 = vadd.f32 %v254, %v378
      %380 = vmatmul.bf16.gmra.mxu0 %v292
      %v381 = vpop.f32.mrf.mxu0
      %v382 = vadd.f32 %v254, %v381
      %v383 = vpop.f32.mrf.mxu0
      %v384 = vadd.f32 %v254, %v383
      %385 = vmatmul.bf16.gmra.mxu0 %v293
      %v386 = vpop.f32.mrf.mxu0
      %v387 = vadd.f32 %v254, %v386
      %v388 = vpop.f32.mrf.mxu0
      %v389 = vadd.f32 %v254, %v388
      %390 = vmatmul.bf16.gmra.mxu0 %v294
      %v391 = vpop.f32.mrf.mxu0
      %v392 = vadd.f32 %v254, %v391
      %v393 = vpop.f32.mrf.mxu0
      %v394 = vadd.f32 %v254, %v393
      %395 = vmatmul.bf16.gmra.mxu0 %v295
      %v396 = vpop.f32.mrf.mxu0
      %v397 = vadd.f32 %v254, %v396
      %v398 = vpop.f32.mrf.mxu0
      %v399 = vadd.f32 %v254, %v398
      %400 = vdwg.mxu0
      %401 = vmax.xlane.f32.xlu0 %v362
      %v402 = vpop.xlane.xlu0 %401
      %403 = vmax.xlane.f32.xlu0 %v364
      %v404 = vpop.xlane.xlu0 %403
      %405 = vmax.xlane.f32.xlu0 %v367
      %v406 = vpop.xlane.xlu0 %405
      %407 = vmax.xlane.f32.xlu0 %v369
      %v408 = vpop.xlane.xlu0 %407
      %409 = vmax.xlane.f32.xlu0 %v372
      %v410 = vpop.xlane.xlu0 %409
      %411 = vmax.xlane.f32.xlu0 %v374
      %v412 = vpop.xlane.xlu0 %411
      %413 = vmax.xlane.f32.xlu0 %v377
      %v414 = vpop.xlane.xlu0 %413
      %415 = vmax.xlane.f32.xlu0 %v379
      %v416 = vpop.xlane.xlu0 %415
      %417 = vmax.xlane.f32.xlu0 %v382
      %v418 = vpop.xlane.xlu0 %417
      %419 = vmax.xlane.f32.xlu0 %v384
      %v420 = vpop.xlane.xlu0 %419
      %421 = vmax.xlane.f32.xlu0 %v387
      %v422 = vpop.xlane.xlu0 %421
      %423 = vmax.xlane.f32.xlu0 %v389
      %v424 = vpop.xlane.xlu0 %423
      %425 = vmax.xlane.f32.xlu0 %v392
      %v426 = vpop.xlane.xlu0 %425
      %427 = vmax.xlane.f32.xlu0 %v394
      %v428 = vpop.xlane.xlu0 %427
      %429 = vmax.xlane.f32.xlu0 %v397
      %v430 = vpop.xlane.xlu0 %429
      %431 = vmax.xlane.f32.xlu0 %v399
      %v432 = vpop.xlane.xlu0 %431
      %v433 = vsub.f32 %v362, %v402
      %v434 = vsub.f32 %v364, %v404
      %v435 = vsub.f32 %v367, %v406
      %v436 = vsub.f32 %v369, %v408
      %v437 = vsub.f32 %v372, %v410
      %v438 = vsub.f32 %v374, %v412
      %v439 = vsub.f32 %v377, %v414
      %v440 = vsub.f32 %v379, %v416
      %v441 = vsub.f32 %v382, %v418
      %v442 = vsub.f32 %v384, %v420
      %v443 = vsub.f32 %v387, %v422
      %v444 = vsub.f32 %v389, %v424
      %v445 = vsub.f32 %v392, %v426
      %v446 = vsub.f32 %v394, %v428
      %v447 = vsub.f32 %v397, %v430
      %v448 = vsub.f32 %v399, %v432
      %v449 = vmul.f32 %v433, 1.442695
      %v450 = vpow.pop %v449
      %v451 = vmul.f32 %v434, 1.442695
      %v452 = vpow.pop %v451
      %v453 = vmul.f32 %v435, 1.442695
      %v454 = vpow.pop %v453
      %v455 = vmul.f32 %v436, 1.442695
      %v456 = vpow.pop %v455
      %v457 = vmul.f32 %v437, 1.442695
      %v458 = vpow.pop %v457
      %v459 = vmul.f32 %v438, 1.442695
      %v460 = vpow.pop %v459
      %v461 = vmul.f32 %v439, 1.442695
      %v462 = vpow.pop %v461
      %v463 = vmul.f32 %v440, 1.442695
      %v464 = vpow.pop %v463
      %v465 = vmul.f32 %v441, 1.442695
      %v466 = vpow.pop %v465
      %v467 = vmul.f32 %v442, 1.442695
      %v468 = vpow.pop %v467
      %v469 = vmul.f32 %v443, 1.442695
      %v470 = vpow.pop %v469
      %v471 = vmul.f32 %v444, 1.442695
      %v472 = vpow.pop %v471
      %v473 = vmul.f32 %v445, 1.442695
      %v474 = vpow.pop %v473
      %v475 = vmul.f32 %v446, 1.442695
      %v476 = vpow.pop %v475
      %v477 = vmul.f32 %v447, 1.442695
      %v478 = vpow.pop %v477
      %v479 = vmul.f32 %v448, 1.442695
      %v480 = vpow.pop %v479
      %481 = vadd.xlane.f32.xlu0 %v450
      %v482 = vpop.xlane.xlu0 %481
      %483 = vadd.xlane.f32.xlu0 %v452
      %v484 = vpop.xlane.xlu0 %483
      %485 = vadd.xlane.f32.xlu0 %v454
      %v486 = vpop.xlane.xlu0 %485
      %487 = vadd.xlane.f32.xlu0 %v456
      %v488 = vpop.xlane.xlu0 %487
      %489 = vadd.xlane.f32.xlu0 %v458
      %v490 = vpop.xlane.xlu0 %489
      %491 = vadd.xlane.f32.xlu0 %v460
      %v492 = vpop.xlane.xlu0 %491
      %493 = vadd.xlane.f32.xlu0 %v462
      %v494 = vpop.xlane.xlu0 %493
      %495 = vadd.xlane.f32.xlu0 %v464
      %v496 = vpop.xlane.xlu0 %495
      %497 = vadd.xlane.f32.xlu0 %v466
      %v498 = vpop.xlane.xlu0 %497
      %499 = vadd.xlane.f32.xlu0 %v468
      %v500 = vpop.xlane.xlu0 %499
      %501 = vadd.xlane.f32.xlu0 %v470
      %v502 = vpop.xlane.xlu0 %501
      %503 = vadd.xlane.f32.xlu0 %v472
      %v504 = vpop.xlane.xlu0 %503
      %505 = vadd.xlane.f32.xlu0 %v474
      %v506 = vpop.xlane.xlu0 %505
      %507 = vadd.xlane.f32.xlu0 %v476
      %v508 = vpop.xlane.xlu0 %507
      %509 = vadd.xlane.f32.xlu0 %v478
      %v510 = vpop.xlane.xlu0 %509
      %511 = vadd.xlane.f32.xlu0 %v480
      %v512 = vpop.xlane.xlu0 %511
      %v513 = vlog2.pop %v482
      %v514 = vmul.f32 %v513, 0.6931472
      %v515 = vlog2.pop %v484
      %v516 = vmul.f32 %v515, 0.6931472
      %v517 = vlog2.pop %v486
      %v518 = vmul.f32 %v517, 0.6931472
      %v519 = vlog2.pop %v488
      %v520 = vmul.f32 %v519, 0.6931472
      %v521 = vlog2.pop %v490
      %v522 = vmul.f32 %v521, 0.6931472
      %v523 = vlog2.pop %v492
      %v524 = vmul.f32 %v523, 0.6931472
      %v525 = vlog2.pop %v494
      %v526 = vmul.f32 %v525, 0.6931472
      %v527 = vlog2.pop %v496
      %v528 = vmul.f32 %v527, 0.6931472
      %v529 = vlog2.pop %v498
      %v530 = vmul.f32 %v529, 0.6931472
      %v531 = vlog2.pop %v500
      %v532 = vmul.f32 %v531, 0.6931472
      %v533 = vlog2.pop %v502
      %v534 = vmul.f32 %v533, 0.6931472
      %v535 = vlog2.pop %v504
      %v536 = vmul.f32 %v535, 0.6931472
      %v537 = vlog2.pop %v506
      %v538 = vmul.f32 %v537, 0.6931472
      %v539 = vlog2.pop %v508
      %v540 = vmul.f32 %v539, 0.6931472
      %v541 = vlog2.pop %v510
      %v542 = vmul.f32 %v541, 0.6931472
      %v543 = vlog2.pop %v512
      %v544 = vmul.f32 %v543, 0.6931472
      %v545 = vlaneseq
      %v546 = vand.u32 %v545, 127
      %v547 = vld [vmem:[%s214] sm:$0xff]
      %v548 = vld [vmem:[%s214 + $0x8] sm:$0xff]
      %v549 = vld [vmem:[%s214 + $0x10] sm:$0xff]
      %v550 = vld [vmem:[%s214 + $0x18] sm:$0xff]
      %v551 = vld [vmem:[%s214 + $0x20] sm:$0xff]
      %v552 = vld [vmem:[%s214 + $0x28] sm:$0xff]
      %v553 = vld [vmem:[%s214 + $0x30] sm:$0xff]
      %v554 = vld [vmem:[%s214 + $0x38] sm:$0xff]
      %v555 = vld [vmem:[%s214 + $0x40] sm:$0xff]
      %v556 = vld [vmem:[%s214 + $0x48] sm:$0xff]
      %v557 = vld [vmem:[%s214 + $0x50] sm:$0xff]
      %v558 = vld [vmem:[%s214 + $0x58] sm:$0xff]
      %v559 = vld [vmem:[%s214 + $0x60] sm:$0xff]
      %v560 = vld [vmem:[%s214 + $0x68] sm:$0xff]
      %v561 = vld [vmem:[%s214 + $0x70] sm:$0xff]
      %v562 = vld [vmem:[%s214 + $0x78] sm:$0xff]
      %563 = vset.pattern.permute.xlu0 0
      %564 = vperm.xlu0 %563, %v547
      %v565 = vpop.permute.xlu0 %564
      %566 = vset.pattern.permute.xlu0 0
      %567 = vperm.xlu0 %566, %v548
      %v568 = vpop.permute.xlu0 %567
      %569 = vset.pattern.permute.xlu0 0
      %570 = vperm.xlu0 %569, %v549
      %v571 = vpop.permute.xlu0 %570
      %572 = vset.pattern.permute.xlu0 0
      %573 = vperm.xlu0 %572, %v550
      %v574 = vpop.permute.xlu0 %573
      %575 = vset.pattern.permute.xlu0 0
      %576 = vperm.xlu0 %575, %v551
      %v577 = vpop.permute.xlu0 %576
      %578 = vset.pattern.permute.xlu0 0
      %579 = vperm.xlu0 %578, %v552
      %v580 = vpop.permute.xlu0 %579
      %581 = vset.pattern.permute.xlu0 0
      %582 = vperm.xlu0 %581, %v553
      %v583 = vpop.permute.xlu0 %582
      %584 = vset.pattern.permute.xlu0 0
      %585 = vperm.xlu0 %584, %v554
      %v586 = vpop.permute.xlu0 %585
      %587 = vset.pattern.permute.xlu0 0
      %588 = vperm.xlu0 %587, %v555
      %v589 = vpop.permute.xlu0 %588
      %590 = vset.pattern.permute.xlu0 0
      %591 = vperm.xlu0 %590, %v556
      %v592 = vpop.permute.xlu0 %591
      %593 = vset.pattern.permute.xlu0 0
      %594 = vperm.xlu0 %593, %v557
      %v595 = vpop.permute.xlu0 %594
      %596 = vset.pattern.permute.xlu0 0
      %597 = vperm.xlu0 %596, %v558
      %v598 = vpop.permute.xlu0 %597
      %599 = vset.pattern.permute.xlu0 0
      %600 = vperm.xlu0 %599, %v559
      %v601 = vpop.permute.xlu0 %600
      %602 = vset.pattern.permute.xlu0 0
      %603 = vperm.xlu0 %602, %v560
      %v604 = vpop.permute.xlu0 %603
      %605 = vset.pattern.permute.xlu0 0
      %606 = vperm.xlu0 %605, %v561
      %v607 = vpop.permute.xlu0 %606
      %608 = vset.pattern.permute.xlu0 0
      %609 = vperm.xlu0 %608, %v562
      %v610 = vpop.permute.xlu0 %609
      %vm611 = vcmp.eq.s32.totalorder %v546, %v565
      %vm612 = vcmp.eq.s32.totalorder %v546, %v568
      %vm613 = vcmp.eq.s32.totalorder %v546, %v571
      %vm614 = vcmp.eq.s32.totalorder %v546, %v574
      %vm615 = vcmp.eq.s32.totalorder %v546, %v577
      %vm616 = vcmp.eq.s32.totalorder %v546, %v580
      %vm617 = vcmp.eq.s32.totalorder %v546, %v583
      %vm618 = vcmp.eq.s32.totalorder %v546, %v586
      %vm619 = vcmp.eq.s32.totalorder %v546, %v589
      %vm620 = vcmp.eq.s32.totalorder %v546, %v592
      %vm621 = vcmp.eq.s32.totalorder %v546, %v595
      %vm622 = vcmp.eq.s32.totalorder %v546, %v598
      %vm623 = vcmp.eq.s32.totalorder %v546, %v601
      %vm624 = vcmp.eq.s32.totalorder %v546, %v604
      %vm625 = vcmp.eq.s32.totalorder %v546, %v607
      %vm626 = vcmp.eq.s32.totalorder %v546, %v610
      %v627 = vsel %vm611, %v362, 0.0
      %v628 = vsel %vm612, %v364, 0.0
      %v629 = vsel %vm613, %v367, 0.0
      %v630 = vsel %vm614, %v369, 0.0
      %v631 = vsel %vm615, %v372, 0.0
      %v632 = vsel %vm616, %v374, 0.0
      %v633 = vsel %vm617, %v377, 0.0
      %v634 = vsel %vm618, %v379, 0.0
      %v635 = vsel %vm619, %v382, 0.0
      %v636 = vsel %vm620, %v384, 0.0
      %v637 = vsel %vm621, %v387, 0.0
      %v638 = vsel %vm622, %v389, 0.0
      %v639 = vsel %vm623, %v392, 0.0
      %v640 = vsel %vm624, %v394, 0.0
      %v641 = vsel %vm625, %v397, 0.0
      %v642 = vsel %vm626, %v399, 0.0
      %643 = vadd.xlane.f32.xlu0 %v627
      %v644 = vpop.xlane.xlu0 %643
      %645 = vadd.xlane.f32.xlu0 %v628
      %v646 = vpop.xlane.xlu0 %645
      %647 = vadd.xlane.f32.xlu0 %v629
      %v648 = vpop.xlane.xlu0 %647
      %649 = vadd.xlane.f32.xlu0 %v630
      %v650 = vpop.xlane.xlu0 %649
      %651 = vadd.xlane.f32.xlu0 %v631
      %v652 = vpop.xlane.xlu0 %651
      %653 = vadd.xlane.f32.xlu0 %v632
      %v654 = vpop.xlane.xlu0 %653
      %655 = vadd.xlane.f32.xlu0 %v633
      %v656 = vpop.xlane.xlu0 %655
      %657 = vadd.xlane.f32.xlu0 %v634
      %v658 = vpop.xlane.xlu0 %657
      %659 = vadd.xlane.f32.xlu0 %v635
      %v660 = vpop.xlane.xlu0 %659
      %661 = vadd.xlane.f32.xlu0 %v636
      %v662 = vpop.xlane.xlu0 %661
      %663 = vadd.xlane.f32.xlu0 %v637
      %v664 = vpop.xlane.xlu0 %663
      %665 = vadd.xlane.f32.xlu0 %v638
      %v666 = vpop.xlane.xlu0 %665
      %667 = vadd.xlane.f32.xlu0 %v639
      %v668 = vpop.xlane.xlu0 %667
      %669 = vadd.xlane.f32.xlu0 %v640
      %v670 = vpop.xlane.xlu0 %669
      %671 = vadd.xlane.f32.xlu0 %v641
      %v672 = vpop.xlane.xlu0 %671
      %673 = vadd.xlane.f32.xlu0 %v642
      %v674 = vpop.xlane.xlu0 %673
      %v675 = vadd.f32 %v402, %v514
      %v676 = vadd.f32 %v404, %v516
      %v677 = vadd.f32 %v406, %v518
      %v678 = vadd.f32 %v408, %v520
      %v679 = vadd.f32 %v410, %v522
      %v680 = vadd.f32 %v412, %v524
      %v681 = vadd.f32 %v414, %v526
      %v682 = vadd.f32 %v416, %v528
      %v683 = vadd.f32 %v418, %v530
      %v684 = vadd.f32 %v420, %v532
      %v685 = vadd.f32 %v422, %v534
      %v686 = vadd.f32 %v424, %v536
      %v687 = vadd.f32 %v426, %v538
      %v688 = vadd.f32 %v428, %v540
      %v689 = vadd.f32 %v430, %v542
      %v690 = vadd.f32 %v432, %v544
      %v691 = vsub.f32 %v675, %v644
      %v692 = vsub.f32 %v676, %v646
      %v693 = vsub.f32 %v677, %v648
      %v694 = vsub.f32 %v678, %v650
      %v695 = vsub.f32 %v679, %v652
      %v696 = vsub.f32 %v680, %v654
      %v697 = vsub.f32 %v681, %v656
      %v698 = vsub.f32 %v682, %v658
      %v699 = vsub.f32 %v683, %v660
      %v700 = vsub.f32 %v684, %v662
      %v701 = vsub.f32 %v685, %v664
      %v702 = vsub.f32 %v686, %v666
      %v703 = vsub.f32 %v687, %v668
      %v704 = vsub.f32 %v688, %v670
      %v705 = vsub.f32 %v689, %v672
      %v706 = vsub.f32 %v690, %v674
      %s707 = smul.u32 %s15, 128
      %v708 = vlaneseq
      %v709 = vshrl.u32 %v708, 7
      %v710 = vadd.s32 %v709, 8
      %v711 = vadd.s32 %v709, 16
      %v712 = vadd.s32 %v709, 24
      %v713 = vadd.s32 %v709, 32
      %v714 = vadd.s32 %v709, 40
      %v715 = vadd.s32 %v709, 48
      %v716 = vadd.s32 %v709, 56
      %v717 = vadd.s32 %v709, 64
      %v718 = vadd.s32 %v709, 72
      %v719 = vadd.s32 %v709, 80
      %v720 = vadd.s32 %v709, 88
      %v721 = vadd.s32 %v709, 96
      %v722 = vadd.s32 %v709, 104
      %v723 = vadd.s32 %v709, 112
      %v724 = vadd.s32 %v709, 120
      %v725 = vstv %s707
      %v726 = vadd.s32 %v725, %v709
      %v727 = vadd.s32 %v725, %v710
      %v728 = vadd.s32 %v725, %v711
      %v729 = vadd.s32 %v725, %v712
      %v730 = vadd.s32 %v725, %v713
      %v731 = vadd.s32 %v725, %v714
      %v732 = vadd.s32 %v725, %v715
      %v733 = vadd.s32 %v725, %v716
      %v734 = vadd.s32 %v725, %v717
      %v735 = vadd.s32 %v725, %v718
      %v736 = vadd.s32 %v725, %v719
      %v737 = vadd.s32 %v725, %v720
      %v738 = vadd.s32 %v725, %v721
      %v739 = vadd.s32 %v725, %v722
      %v740 = vadd.s32 %v725, %v723
      %v741 = vadd.s32 %v725, %v724
      %vm742 = vcmp.lt.s32.totalorder %v726, 200
      %vm743 = vcmp.lt.s32.totalorder %v727, 200
      %vm744 = vcmp.lt.s32.totalorder %v728, 200
      %vm745 = vcmp.lt.s32.totalorder %v729, 200
      %vm746 = vcmp.lt.s32.totalorder %v730, 200
      %vm747 = vcmp.lt.s32.totalorder %v731, 200
      %vm748 = vcmp.lt.s32.totalorder %v732, 200
      %vm749 = vcmp.lt.s32.totalorder %v733, 200
      %vm750 = vcmp.lt.s32.totalorder %v734, 200
      %vm751 = vcmp.lt.s32.totalorder %v735, 200
      %vm752 = vcmp.lt.s32.totalorder %v736, 200
      %vm753 = vcmp.lt.s32.totalorder %v737, 200
      %vm754 = vcmp.lt.s32.totalorder %v738, 200
      %vm755 = vcmp.lt.s32.totalorder %v739, 200
      %vm756 = vcmp.lt.s32.totalorder %v740, 200
      %vm757 = vcmp.lt.s32.totalorder %v741, 200
      %v758 = vsel %vm742, %v691, 0.0
      %v759 = vsel %vm743, %v692, 0.0
      %v760 = vsel %vm744, %v693, 0.0
      %v761 = vsel %vm745, %v694, 0.0
      %v762 = vsel %vm746, %v695, 0.0
      %v763 = vsel %vm747, %v696, 0.0
      %v764 = vsel %vm748, %v697, 0.0
      %v765 = vsel %vm749, %v698, 0.0
      %v766 = vsel %vm750, %v699, 0.0
      %v767 = vsel %vm751, %v700, 0.0
      %v768 = vsel %vm752, %v701, 0.0
      %v769 = vsel %vm753, %v702, 0.0
      %v770 = vsel %vm754, %v703, 0.0
      %v771 = vsel %vm755, %v704, 0.0
      %v772 = vsel %vm756, %v705, 0.0
      %v773 = vsel %vm757, %v706, 0.0
      %vm774 = vcmask 7168
      %v775 = vsel %vm774, %v758, 0.0
      %v776 = vsel %vm774, %v759, 0.0
      %v777 = vadd.f32 %v775, %v776
      %v778 = vsel %vm774, %v760, 0.0
      %v779 = vadd.f32 %v777, %v778
      %v780 = vsel %vm774, %v761, 0.0
      %v781 = vadd.f32 %v779, %v780
      %v782 = vsel %vm774, %v762, 0.0
      %v783 = vadd.f32 %v781, %v782
      %v784 = vsel %vm774, %v763, 0.0
      %v785 = vadd.f32 %v783, %v784
      %v786 = vsel %vm774, %v764, 0.0
      %v787 = vadd.f32 %v785, %v786
      %v788 = vsel %vm774, %v765, 0.0
      %v789 = vadd.f32 %v787, %v788
      %v790 = vsel %vm774, %v766, 0.0
      %v791 = vadd.f32 %v789, %v790
      %v792 = vsel %vm774, %v767, 0.0
      %v793 = vadd.f32 %v791, %v792
      %v794 = vsel %vm774, %v768, 0.0
      %v795 = vadd.f32 %v793, %v794
      %v796 = vsel %vm774, %v769, 0.0
      %v797 = vadd.f32 %v795, %v796
      %v798 = vsel %vm774, %v770, 0.0
      %v799 = vadd.f32 %v797, %v798
      %v800 = vsel %vm774, %v771, 0.0
      %v801 = vadd.f32 %v799, %v800
      %v802 = vsel %vm774, %v772, 0.0
      %v803 = vadd.f32 %v801, %v802
      %v804 = vsel %vm774, %v773, 0.0
      %v805 = vadd.f32 %v803, %v804
      %806 = vadd.xlane.f32.xlu0 %v805
      %v807 = vpop.xlane.xlu0 %806
      %v808 = vrot.slane %v807, 4
      %v809 = vadd.f32 %v807, %v808
      %v810 = vrot.slane %v809, 2
      %v811 = vadd.f32 %v809, %v810
      %v812 = vrot.slane %v811, 1
      %v813 = vadd.f32 %v811, %v812
      %s814 = vtos %v813
      %v815 = vstv %s814
      %816 = vst [vmem:[%s219] sm:$0xff] %v815
      %p817 = scmp.lt.s32.totalorder %s15, 1
      %s818 = scalar_select %p817, %s15, 1
      %s819 = smul.addr %s818, 8
      %s820 = scalar_lea.vmem %s4, %s819
      // Predicated region
      $region37: #{net_forward.1} parent=35 // pred_check
        %p821 = pneg %p127
      $region38: #{net_forward.1} parent=35 // pred_check_branch
        %823 = sbr.rel (%p821) target = $region40
      $region39: #{net_forward.1} parent=35 // pred_region
        _
      $region40: #{net_forward.1} parent=35 // pred_fallthru
        _
    $region36: #{net_forward.1} parent=5 // pred_fallthru
      _
    %p824 = scmp.le.s32.totalorder 2, %s10
    // Predicated region
    $region41: #{net_forward.1} parent=5 // pred_check
      %p825 = pneg %p824
    $region42: #{net_forward.1} parent=5 // pred_check_branch
      %827 = sbr.rel (%p825) target = $region44
    $region43: #{net_forward.1} parent=5 // pred_region
      %s828 = ssub.s32 %s10, 2
      // Predicated region
      $region45: #{net_forward.1} parent=43 // pred_check
        %p829 = pneg %p133
      $region46: #{net_forward.1} parent=43 // pred_check_branch
        %831 = sbr.rel (%p829) target = $region48
      $region47: #{net_forward.1} parent=43 // pred_region
        %p832 = scmp.lt.s32.totalorder %s16, 1
        %s833 = scalar_select %p832, %s16, 1
        %s834 = smul.addr %s833, 8
        %s835 = scalar_lea.vmem %s4, %s834
      $region48: #{net_forward.1} parent=43 // pred_fallthru
        _
    $region44: #{net_forward.1} parent=5 // pred_fallthru
      _
  $region6: #{net_forward.1} parent=0 // loop_footer
    %s14 = sadd.s32 1, %s10
  $region7: #{net_forward.1} parent=0 // loop_footer_branch
    %9 = sbr.rel target = $region3
  $region8: #{net_forward.1} parent=0 // loop_exit
    _

</llo_original>
